<compile_context>
chip_gen: v6e
topology: v6e:2x2x1
jax: 0.10.0
libtpu: 0.0.40
codegen_flags: <defaults>
</compile_context>

<pallas_src>
import functools

import jax
import jax.numpy as jnp
from jax.experimental import pallas as pl
from jax.experimental.pallas import tpu as pltpu

NEG_SLOPE = 0.01  # F.leaky_relu default negative slope


# --------------------------------------------------------------------------- #
# Hardware introspection helpers (generation-aware tiling / VMEM budgeting)
# --------------------------------------------------------------------------- #
def _device_kind():
    try:
        devs = jax.devices()
        return devs[0].device_kind.lower() if devs else ""
    except Exception:
        return ""


def _vmem_capacity_bytes():
    try:
        return int(pltpu.get_tpu_info().vmem_capacity_bytes)
    except Exception:
        return 128 * 1024 * 1024          # v5e / v6e physical VMEM


def _const_spec(shape, index_map):
    """BlockSpec for a constant-index block; single-buffered when supported."""
    try:
        return pl.BlockSpec(shape, index_map, pipeline_mode=pl.Buffered(1))
    except Exception:
        return pl.BlockSpec(shape, index_map)


# --------------------------------------------------------------------------- #
# Pass 1: fused-head projection + attention scores (single wide MXU matmul)
# --------------------------------------------------------------------------- #
def _gat_project_kernel(h_ref, w_ref, z_ref, s_ref):
    # h_ref: (tm, in_dim) f32    w_ref: (in_dim, H*D + 2H) f32
    # z_ref: (tm, H*D) bf16      s_ref: (tm, 2H) f32  ([0:H]=s_src, [H:2H]=s_dst)
    hd = z_ref.shape[1]
    zs = jnp.dot(h_ref[...], w_ref[...], preferred_element_type=jnp.float32)
    z_ref[...] = zs[:, :hd].astype(z_ref.dtype)
    s_ref[...] = zs[:, hd:]


# --------------------------------------------------------------------------- #
# Pass 2: per-destination-tile masked softmax + weighted aggregation
# --------------------------------------------------------------------------- #
def _gat_attn_kernel(sdst_ref, ssrc_ref, adjt_ref, z_ref, out_ref, *,
                     num_heads, out_dim, exp_bf16):
    # sdst_ref: (tq, H) f32   ssrc_ref: (H, N) f32   adjt_ref: (tq, N) int8
    # z_ref   : (N, HD) bf16  out_ref : (tq, HD) f32
    mask = adjt_ref[...] > 0                       # read the N^2 mask once
    sdst = sdst_ref[...]
    ssrc = ssrc_ref[...]
    n_src = z_ref.shape[0]
    neg_big = jnp.float32(-1e30)
    # MXU-based row-sum operand (frees the XLUs from H cross-lane reductions).
    ones_col = jnp.ones((n_src, 1), jnp.bfloat16)

    for k in range(num_heads):                     # static, unrolled
        # e[dst, src] = leaky_relu(a_dst.z_dst + a_src.z_src), masked non-edges
        e = sdst[:, k:k + 1] + ssrc[k:k + 1, :]                        # (tq, N)
        e = jnp.maximum(e, NEG_SLOPE * e)          # leaky_relu: single VALU max
        e = jnp.where(mask, e, neg_big)
        m = jnp.max(e, axis=-1, keepdims=True)                         # (tq, 1)
        t = e - m
        if exp_bf16:                               # bf16 EUP path (v6e / v7x)
            p = jnp.exp(t.astype(jnp.bfloat16))                        # (tq, N)
        else:                                      # v5e has no bf16 VPU/EUP
            p = jnp.exp(t).astype(jnp.bfloat16)
        zk = z_ref[:, k * out_dim:(k + 1) * out_dim]                   # (N, D)
        hk = jnp.dot(p, zk, preferred_element_type=jnp.float32)        # (tq, D)
        row_sum = jnp.dot(p, ones_col, preferred_element_type=jnp.float32)
        inv = pl.reciprocal(row_sum, approx=True)  # EUP, deferred normalization
        # Zero-in-degree rows keep m == -1e30; emit 0 (DGL zero-fills nodes that
        # receive no messages) instead of a bogus uniform softmax.
        valid = m > jnp.float32(-1e29)
        hk = jnp.where(valid, hk * inv, jnp.float32(0.0))
        # direct per-head store into the lane-dense (tq, H*D) slab (no concat)
        out_ref[:, k * out_dim:(k + 1) * out_dim] = hk.astype(out_ref.dtype)


# --------------------------------------------------------------------------- #
# Tile sizing
# --------------------------------------------------------------------------- #
def _choose_dst_tile(n, num_heads, out_dim, vmem_ceiling, num_cores):
    hd = num_heads * out_dim
    # resident single-buffered blocks: z (bf16) + s_src (f32)
    resident = n * hd * 2 + num_heads * n * 4
    budget = max(vmem_ceiling - resident, 2 * 1024 * 1024)
    # bytes per dst row: adj stripe (int8 x2 bufs) + out slab (f32 x2)
    # + s_dst (f32 x2) + e/p/mask temporaries of the unrolled head loop (~8 B/src)
    per_row = 2 * n + 2 * hd * 4 + 2 * num_heads * 4 + 8 * n
    tq = budget // max(per_row, 1)
    tq = min(tq, n, 1024)
    if n > 64:
        # keep >= 2 grid steps per TensorCore (megacore sharding + DMA overlap)
        tq = min(tq, -(-n // (2 * max(num_cores, 1))))
    if tq < n:
        tq = max(8, (tq // 32) * 32 if tq >= 32 else (tq // 8) * 8)
    return int(max(8, min(tq, n)))


def _choose_row_tile(n, num_cores):
    tm = min(n, 512)
    if n > 64:
        tm = min(tm, -(-n // (2 * max(num_cores, 1))))
    if tm < n:
        tm = max(8, (tm // 8) * 8)
    return int(min(tm, n))


# --------------------------------------------------------------------------- #
# Wrapper
# --------------------------------------------------------------------------- #
def multi_head_gat(h, adj, w, a, merge="cat", *, dst_tile=None, row_tile=None):
    """h: (N, in_dim); adj: (N, N) with adj[src, dst] > 0 for edge src->dst;
    w: (H, in_dim, out_dim) per-head fc weight (stored as W^T);
    a: (H, 2, out_dim) = [a_src ; a_dst] attention vectors."""
    N, in_dim = h.shape
    H, _, D = w.shape
    HD = H * D

    kind = _device_kind()
    exp_bf16 = ("v6" in kind) or ("v7" in kind)    # v5e has no bf16 VPU/EUP
    num_cores = 2 if "v7" in kind else 1           # v7x: 2 TensorCores / chip
    vmem_cap = _vmem_capacity_bytes()
    vmem_ceiling = int(vmem_cap * 4 // 5)          # ~51 MiB v7x, ~102 MiB v5e/v6e

    # ---- tiny host-side parameter repacking (O(in_dim * H * D)) ----
    w_all = jnp.transpose(w, (1, 0, 2)).reshape(in_dim, HD).astype(jnp.float32)
    eye = jnp.eye(H, dtype=jnp.float32)
    a_src_blk = (a[:, 0, :, None] * eye[:, None, :]).reshape(HD, H)    # block-diag
    a_dst_blk = (a[:, 1, :, None] * eye[:, None, :]).reshape(HD, H)
    a_blk = jnp.concatenate([a_src_blk, a_dst_blk], axis=1).astype(jnp.float32)
    # fuse scores into the same matmul:  [z | s] = h @ [W_all | W_all @ A_blk]
    w_fused = jnp.concatenate([w_all, w_all @ a_blk], axis=1)          # (in_dim, HD+2H)
    FW = HD + 2 * H

    # ---- pass 1: projection + scores ----
    tm = row_tile or _choose_row_tile(N, num_cores)
    proj_cost = pl.CostEstimate(
        flops=2 * N * in_dim * FW, transcendentals=0,
        bytes_accessed=(N * in_dim + in_dim * FW + N * 2 * H) * 4 + N * HD * 2)
    z_bf16, scores = pl.pallas_call(
        _gat_project_kernel,
        out_shape=(jax.ShapeDtypeStruct((N, HD), jnp.bfloat16),
                   jax.ShapeDtypeStruct((N, 2 * H), jnp.float32)),
        grid_spec=pltpu.PrefetchScalarGridSpec(
            num_scalar_prefetch=0,
            grid=(pl.cdiv(N, tm),),
            in_specs=[
                pl.BlockSpec((tm, in_dim), lambda i: (i, 0)),
                _const_spec((in_dim, FW), lambda i: (0, 0)),
            ],
            out_specs=[
                pl.BlockSpec((tm, HD), lambda i: (i, 0)),
                pl.BlockSpec((tm, 2 * H), lambda i: (i, 0)),
            ]),
        compiler_params=pltpu.CompilerParams(
            dimension_semantics=("parallel",)),
        cost_estimate=proj_cost,
    )(h.astype(jnp.float32), w_fused)

    s_src_t = scores[:, :H].T                      # (H, N): row k broadcast over srcs
    s_dst = scores[:, H:]                          # (N, H)
    # TODO(synk): if adj is reused across layers/steps, hoist this transpose+cast
    #             (an extra N^2 HBM round trip) out of the per-call path.
    adj_t = (jnp.asarray(adj).T > 0).astype(jnp.int8)   # int8 mask, [dst, src]

    # ---- pass 2: masked softmax + aggregation, tiled over destination nodes ----
    tq = min(dst_tile or _choose_dst_tile(N, H, D, vmem_ceiling, num_cores), N)
    est = (N * HD * 2 + H * N * 4                  # single-buffered z + s_src
           + 2 * tq * N                            # adj stripes (int8, x2 buffers)
           + 2 * tq * H * 4 + 2 * tq * HD * 4      # s_dst tiles + output slabs
           + 8 * tq * N)                           # e/p/mask temporaries
    vmem_limit = int(min(max(est * 3 // 2, 32 * 1024 * 1024), vmem_ceiling))
    attn_cost = pl.CostEstimate(
        flops=2 * H * N * N * (D + 1) + 6 * H * N * N,
        transcendentals=H * N * N,
        bytes_accessed=N * N + N * HD * 2 + N * 2 * H * 4 + N * HD * 4)
    out = pl.pallas_call(
        functools.partial(_gat_attn_kernel, num_heads=H, out_dim=D,
                          exp_bf16=exp_bf16),
        out_shape=jax.ShapeDtypeStruct((N, HD), jnp.float32),
        grid_spec=pltpu.PrefetchScalarGridSpec(
            num_scalar_prefetch=0,
            grid=(pl.cdiv(N, tq),),
            in_specs=[
                pl.BlockSpec((tq, H), lambda i: (i, 0)),       # s_dst tile
                _const_spec((H, N), lambda i: (0, 0)),         # s_src (all sources)
                pl.BlockSpec((tq, N), lambda i: (i, 0)),       # adj_t stripe (int8)
                _const_spec((N, HD), lambda i: (0, 0)),        # z (all sources, bf16)
            ],
            out_specs=pl.BlockSpec((tq, HD), lambda i: (i, 0)),
        ),
        compiler_params=pltpu.CompilerParams(
            dimension_semantics=("parallel",),
            vmem_limit_bytes=vmem_limit),
        cost_estimate=attn_cost,
    )(s_dst, s_src_t, adj_t, z_bf16)

    if merge == "cat":
        return out                                 # already (N, H*D) == cat(dim=1)
    return jnp.mean(out)                           # torch.mean(torch.stack(outs))


def _reference(h, adj, w, a):
    """Pure-JAX f32 reference of the multi-head GAT forward (merge='cat')."""
    outs = []
    for k in range(w.shape[0]):
        z = h @ w[k]                               # (N, out_dim)
        s_src = z @ a[k, 0]                        # (N,)
        s_dst = z @ a[k, 1]                        # (N,)
        e = s_src[:, None] + s_dst[None, :]        # e[src, dst]
        e = jnp.where(e > 0, e, NEG_SLOPE * e)
        e = jnp.where(adj > 0, e, -jnp.inf)
        alpha = jax.nn.softmax(e, axis=0)          # softmax over src per dst
        outs.append(alpha.T @ z)                   # (N, out_dim)
    return jnp.concatenate(outs, axis=1)


if __name__ == "__main__":
    N, in_dim, out_dim, num_heads = 256, 32, 16, 4

    key = jax.random.PRNGKey(0)
    kh, kw, ka, kg = jax.random.split(key, 4)

    h = jax.random.normal(kh, (N, in_dim), jnp.float32)
    # fc weight per head, stored as W^T: (num_heads, in_dim, out_dim)
    w = jax.random.normal(kw, (num_heads, in_dim, out_dim), jnp.float32) / jnp.sqrt(in_dim)
    # attn_fc weight per head, split into [a_src; a_dst]: (num_heads, 2, out_dim)
    a = jax.random.normal(ka, (num_heads, 2, out_dim), jnp.float32) * 0.5

    # deterministic random graph with self-loops (every node has >= 1 in-edge)
    adj = jax.random.bernoulli(kg, 0.1, (N, N)).astype(jnp.float32)
    adj = jnp.maximum(adj, jnp.eye(N, dtype=jnp.float32))

    out = multi_head_gat(h, adj, w, a, merge="cat")
    out = jax.block_until_ready(out)

    ref = _reference(h, adj, w, a)
    assert out.shape == (N, num_heads * out_dim)
    err = float(jnp.max(jnp.abs(out - ref)))
    # bf16 MXU inputs, bf16 exp (on v6e/v7x) and approx reciprocal => looser tol
    assert jnp.allclose(out, ref, atol=3e-2, rtol=3e-2), (
        f"mismatch vs reference: max abs err {err:.3e}")

    print("KERNEL_OK")
</pallas_src>

<mosaic_0001>
module attributes {stable_mosaic.version = 11 : i64} {
  func.func @_gat_project_kernel(%arg0: i32, %arg1: memref<128x32xf32, #tpu.memory_space<vmem>>, %arg2: memref<32x72xf32, #tpu.memory_space<vmem>>, %arg3: memref<128x64xbf16, #tpu.memory_space<vmem>>, %arg4: memref<128x8xf32, #tpu.memory_space<vmem>>) attributes {dimension_semantics = [#tpu.dimension_semantics<parallel>], iteration_bounds = array<i64: 2>, scalar_prefetch = 0 : i64, scratch_operands = 0 : i64, tpu.core_type = #tpu.core_type<tc>, window_params = [{transform_indices = @transform_0, window_bounds = array<i64: 128, 32>}, {pipeline_mode = #tpu.pipeline_mode<synchronous>, transform_indices = @transform_1, window_bounds = array<i64: 32, 72>}, {transform_indices = @transform_2, window_bounds = array<i64: 128, 64>}, {transform_indices = @transform_3, window_bounds = array<i64: 128, 8>}]} {
    %c0 = arith.constant 0 : index
    %c0_0 = arith.constant 0 : index
    %0 = vector.load %arg1[%c0, %c0_0] : memref<128x32xf32, #tpu.memory_space<vmem>>, vector<128x32xf32>
    %c0_1 = arith.constant 0 : index
    %c0_2 = arith.constant 0 : index
    %1 = vector.load %arg2[%c0_1, %c0_2] : memref<32x72xf32, #tpu.memory_space<vmem>>, vector<32x72xf32>
    %cst = arith.constant dense<0.000000e+00> : vector<128x72xf32>
    %2 = tpu.matmul %0, %1, %cst {dimension_numbers = #tpu.dot_dimension_numbers<[1], [0], [0], [1], [0, 0, 1, 1], [], []>} : vector<128x32xf32>, vector<32x72xf32>, vector<128x72xf32> -> vector<128x72xf32>
    %3 = vector.extract_strided_slice %2 {offsets = [0, 0], sizes = [128, 64], strides = [1, 1]} : vector<128x72xf32> to vector<128x64xf32>
    %4 = arith.truncf %3 : vector<128x64xf32> to vector<128x64xbf16>
    %c0_3 = arith.constant 0 : index
    %c0_4 = arith.constant 0 : index
    %5 = vector.load %arg3[%c0_3, %c0_4] : memref<128x64xbf16, #tpu.memory_space<vmem>>, vector<128x64xbf16>
    tpu.vector_store %arg3[%c0_3, %c0_4], %4 {strides = array<i32>} : memref<128x64xbf16, #tpu.memory_space<vmem>>, vector<128x64xbf16>,
    %6 = vector.extract_strided_slice %2 {offsets = [0, 64], sizes = [128, 8], strides = [1, 1]} : vector<128x72xf32> to vector<128x8xf32>
    %c0_5 = arith.constant 0 : index
    %c0_6 = arith.constant 0 : index
    %7 = vector.load %arg4[%c0_5, %c0_6] : memref<128x8xf32, #tpu.memory_space<vmem>>, vector<128x8xf32>
    tpu.vector_store %arg4[%c0_5, %c0_6], %6 {strides = array<i32>} : memref<128x8xf32, #tpu.memory_space<vmem>>, vector<128x8xf32>,
    return
  }
  func.func @transform_0(%arg0: i32) -> (i32, i32) {
    %c0_i32 = arith.constant 0 : i32
    %c0_i32_0 = arith.constant 0 : i32
    return %arg0, %c0_i32 : i32, i32
  }
  func.func @transform_1(%arg0: i32) -> (i32, i32) {
    %c0_i32 = arith.constant 0 : i32
    %c0_i32_0 = arith.constant 0 : i32
    %c0_i32_1 = arith.constant 0 : i32
    return %c0_i32, %c0_i32_0 : i32, i32
  }
  func.func @transform_2(%arg0: i32) -> (i32, i32) {
    %c0_i32 = arith.constant 0 : i32
    %c0_i32_0 = arith.constant 0 : i32
    return %arg0, %c0_i32 : i32, i32
  }
  func.func @transform_3(%arg0: i32) -> (i32, i32) {
    %c0_i32 = arith.constant 0 : i32
    %c0_i32_0 = arith.constant 0 : i32
    return %arg0, %c0_i32 : i32, i32
  }
}

</mosaic_0001>

<llo_original>
// kernel: tpu_custom_call.1
$region0: #{tpu_custom_call.1}
  #allocation0 [shape = 'u32[]', space=smem, size = 0x4, offset = 0x4, fixed_abs, tag = 'smem constant byte address 0x4 - core index']
  #allocation1 [shape = 'u32[144,128]{1,0:T(1,128)}', space=vmem, size = 0x12000, scoped, tag = 'internal scratch']
  %s0 = inlined_call_operand.vmem [shape: f32[256,32], index: 0, kind: input, shape index: {}]
  %s1 = inlined_call_operand.vmem [shape: f32[32,72], index: 1, kind: input, shape index: {}]
  %s2 = inlined_call_operand.vmem [shape: bf16[256,64], index: 2, kind: output, shape index: {0}]
  %s3 = inlined_call_operand.vmem [shape: f32[256,8], index: 3, kind: output, shape index: {1}]
  %4 = xla_tuple %s2, %s3
  %s5 = sld [smem:[#allocation0]]
  $region49: #{tpu_custom_call.1} parent=0
    _
  %s7 = ssub.s32 1, %s5
  %s8 = scalar_select 0, %s7, %s5
  loop: start=0, step=1, limit=4
  $region2: #{tpu_custom_call.1} parent=0 // loop_pre_header
    _
  $region3: #{tpu_custom_call.1} parent=0 // loop_header
    %s10 = sphi 0, %s14
    %p11 = scmp.ge.s32.totalorder %s10, 4
    %s20 = sphi 0, %s22
    %s23 = sphi 0, %s20
    %s24 = sphi 0, %s23
    %s40 = sphi 0, %s24
    %s44 = sphi 0, %s44
    %s46 = sphi 0, %s44
    %s47 = sphi 0, %s46
    %s61 = sphi 0, %s47
    %s67 = sphi 0, %s69
    %s70 = sphi 0, %s67
    %s71 = sphi 0, %s70
    %s87 = sphi 0, %s71
    %s93 = sphi 0, %s95
    %s96 = sphi 0, %s93
    %s97 = sphi 0, %s96
    %s113 = sphi 0, %s97
  $region4: #{tpu_custom_call.1} parent=0 // loop_header_branch
    %13 = sbr.rel (%p11) target = $region8
  $region5: #{tpu_custom_call.1} parent=0 // loop_body
    %s15 = ssub.s32 %s10, 1
    %s16 = ssub.s32 %s10, 2
    %s17 = sadd.s32 %s10, 1
    %s18 = ssub.s32 %s10, %s17
    %p19 = scmp.eq.s32.totalorder %s18, 0
    %s21 = sadd.s32 %s20, 1
    %s22 = scalar_select %p19, %s20, %s21
    %p25 = pneg %p19
    %p26 = scmp.eq.s32.totalorder %s10, 1
    %p27 = por %p25, %p26
    %p28 = scmp.ne.s32.totalorder %s20, %s23
    %p29 = scmp.eq.s32.totalorder %s10, 0
    %p30 = por %p28, %p29
    %p31 = scmp.ne.s32.totalorder %s20, %s23
    %p32 = scmp.eq.s32.totalorder %s15, 1
    %p33 = por %p31, %p32
    %p34 = scmp.ne.s32.totalorder %s23, %s24
    %p35 = scmp.eq.s32.totalorder %s15, 0
    %p36 = por %p34, %p35
    %p37 = scmp.ne.s32.totalorder %s23, %s24
    %p38 = scmp.eq.s32.totalorder %s16, 1
    %p39 = por %p37, %p38
    %p41 = scmp.ne.s32.totalorder %s24, %s40
    %p42 = scmp.eq.s32.totalorder %s16, 0
    %p43 = por %p41, %p42
    %s45 = sadd.s32 %s44, 1
    %p48 = scmp.eq.s32.totalorder %s10, 1
    %p49 = scmp.ne.s32.totalorder %s44, %s46
    %p50 = scmp.eq.s32.totalorder %s10, 0
    %p51 = por %p49, %p50
    %p52 = scmp.ne.s32.totalorder %s44, %s46
    %p53 = scmp.eq.s32.totalorder %s15, 1
    %p54 = por %p52, %p53
    %p55 = scmp.ne.s32.totalorder %s46, %s47
    %p56 = scmp.eq.s32.totalorder %s15, 0
    %p57 = por %p55, %p56
    %p58 = scmp.ne.s32.totalorder %s46, %s47
    %p59 = scmp.eq.s32.totalorder %s16, 1
    %p60 = por %p58, %p59
    %p62 = scmp.ne.s32.totalorder %s47, %s61
    %p63 = scmp.eq.s32.totalorder %s16, 0
    %p64 = por %p62, %p63
    %s65 = ssub.s32 %s10, %s17
    %p66 = scmp.eq.s32.totalorder %s65, 0
    %s68 = sadd.s32 %s67, 1
    %s69 = scalar_select %p66, %s67, %s68
    %p72 = pneg %p66
    %p73 = scmp.eq.s32.totalorder %s10, 1
    %p74 = por %p72, %p73
    %p75 = scmp.ne.s32.totalorder %s67, %s70
    %p76 = scmp.eq.s32.totalorder %s10, 0
    %p77 = por %p75, %p76
    %p78 = scmp.ne.s32.totalorder %s67, %s70
    %p79 = scmp.eq.s32.totalorder %s15, 1
    %p80 = por %p78, %p79
    %p81 = scmp.ne.s32.totalorder %s70, %s71
    %p82 = scmp.eq.s32.totalorder %s15, 0
    %p83 = por %p81, %p82
    %p84 = scmp.ne.s32.totalorder %s70, %s71
    %p85 = scmp.eq.s32.totalorder %s16, 1
    %p86 = por %p84, %p85
    %p88 = scmp.ne.s32.totalorder %s71, %s87
    %p89 = scmp.eq.s32.totalorder %s16, 0
    %p90 = por %p88, %p89
    %s91 = ssub.s32 %s10, %s17
    %p92 = scmp.eq.s32.totalorder %s91, 0
    %s94 = sadd.s32 %s93, 1
    %s95 = scalar_select %p92, %s93, %s94
    %p98 = pneg %p92
    %p99 = scmp.eq.s32.totalorder %s10, 1
    %p100 = por %p98, %p99
    %p101 = scmp.ne.s32.totalorder %s93, %s96
    %p102 = scmp.eq.s32.totalorder %s10, 0
    %p103 = por %p101, %p102
    %p104 = scmp.ne.s32.totalorder %s93, %s96
    %p105 = scmp.eq.s32.totalorder %s15, 1
    %p106 = por %p104, %p105
    %p107 = scmp.ne.s32.totalorder %s96, %s97
    %p108 = scmp.eq.s32.totalorder %s15, 0
    %p109 = por %p107, %p108
    %p110 = scmp.ne.s32.totalorder %s96, %s97
    %p111 = scmp.eq.s32.totalorder %s16, 1
    %p112 = por %p110, %p111
    %p114 = scmp.ne.s32.totalorder %s97, %s113
    %p115 = scmp.eq.s32.totalorder %s16, 0
    %p116 = por %p114, %p115
    %p117 = scmp.le.s32.totalorder 1, %s10
    %p118 = scmp.lt.s32.totalorder %s10, 3
    %p119 = pnand %p117, %p118
    %p120 = pneg %p119
    // Predicated region
    $region9: #{tpu_custom_call.1} parent=5 // pred_check
      _
    $region10: #{tpu_custom_call.1} parent=5 // pred_check_branch
      %122 = sbr.rel (%p119) target = $region12
    $region11: #{tpu_custom_call.1} parent=5 // pred_region
      %s123 = ssub.s32 %s10, 1
      // Predicated region
      $region13: #{tpu_custom_call.1} parent=11 // pred_check
        %p124 = pneg %p57
      $region14: #{tpu_custom_call.1} parent=11 // pred_check_branch
        %126 = sbr.rel (%p124) target = $region16
      $region15: #{tpu_custom_call.1} parent=11 // pred_region
        _
      $region16: #{tpu_custom_call.1} parent=11 // pred_fallthru
        _
    $region12: #{tpu_custom_call.1} parent=5 // pred_fallthru
      _
    %p127 = scmp.lt.s32.totalorder %s10, 2
    // Predicated region
    $region17: #{tpu_custom_call.1} parent=5 // pred_check
      %p128 = pneg %p127
    $region18: #{tpu_custom_call.1} parent=5 // pred_check_branch
      %130 = sbr.rel (%p128) target = $region20
    $region19: #{tpu_custom_call.1} parent=5 // pred_region
      // Predicated region
      $region21: #{tpu_custom_call.1} parent=19 // pred_check
        %p131 = pneg %p30
      $region22: #{tpu_custom_call.1} parent=19 // pred_check_branch
        %133 = sbr.rel (%p131) target = $region24
      $region23: #{tpu_custom_call.1} parent=19 // pred_region
        %s134 = smul.u32 16, %s10
        %p135 = scmp.lt.s32.totalorder %s134, 31
        %s136 = scalar_select %p135, %s134, 31
        %s137 = smul.addr %s136, 8
        %s138 = scalar_lea.vmem %s0, %s137
        %s139 = smul.u32 16, %s10
      $region24: #{tpu_custom_call.1} parent=19 // pred_fallthru
        _
    $region20: #{tpu_custom_call.1} parent=5 // pred_fallthru
      _
    %p140 = scmp.le.s32.totalorder 1, %s10
    %p141 = scmp.lt.s32.totalorder %s10, 3
    %p142 = pnand %p140, %p141
    %p143 = pneg %p142
    // Predicated region
    $region25: #{tpu_custom_call.1} parent=5 // pred_check
      _
    $region26: #{tpu_custom_call.1} parent=5 // pred_check_branch
      %145 = sbr.rel (%p142) target = $region28
    $region27: #{tpu_custom_call.1} parent=5 // pred_region
      %s146 = ssub.s32 %s10, 1
      %s147 = smul.u32 16, %s15
      %p148 = scmp.lt.s32.totalorder %s147, 31
      %s149 = scalar_select %p148, %s147, 31
      %s150 = smul.addr %s149, 8
      %s151 = scalar_lea.vmem %s0, %s150
      %p152 = pneg %p36
      %p153 = pneg %p33
      %p154 = pneg %p57
      %p155 = pneg %p54
      %p156 = pneg %p83
      %p157 = pneg %p80
      %s158 = smul.u32 16, %s15
      %p159 = scmp.lt.s32.totalorder %s158, 31
      %s160 = scalar_select %p159, %s158, 31
      %s161 = smul.addr %s160, 4
      %s162 = scalar_lea.vmem %s2, %s161
      %p163 = pneg %p109
      %p164 = pneg %p106
      %s165 = smul.u32 16, %s15
      %p166 = scmp.lt.s32.totalorder %s165, 31
      %s167 = scalar_select %p166, %s165, 31
      %s168 = smul.addr %s167, 8
      %s169 = scalar_lea.vmem %s3, %s168
      %s170 = smul.u32 16, %s15
      %p171 = scmp.lt.s32.totalorder %s170, 31
      %s172 = scalar_select %p171, %s170, 31
      %s173 = smul.addr %s172, 8
      %s174 = scalar_lea.vmem %s0, %s173
      %s175 = smul.u32 16, %s15
      %s176 = smul.u32 16, %s15
      %p177 = scmp.lt.s32.totalorder %s176, 31
      %s178 = scalar_select %p177, %s176, 31
      %s179 = smul.addr %s178, 4
      %s180 = scalar_lea.vmem %s2, %s179
      %s181 = smul.u32 16, %s15
      %s182 = smul.u32 16, %s15
      %p183 = scmp.lt.s32.totalorder %s182, 31
      %s184 = scalar_select %p183, %s182, 31
      %s185 = smul.addr %s184, 8
      %s186 = scalar_lea.vmem %s3, %s185
      %s187 = smul.u32 16, %s15
      %v188 = vld [vmem:[%s174] sm:$0xff]
      %v189 = vld [vmem:[%s174 + $0x8] sm:$0xff]
      %v190 = vld [vmem:[%s174 + $0x10] sm:$0xff]
      %v191 = vld [vmem:[%s174 + $0x18] sm:$0xff]
      %v192 = vld [vmem:[%s174 + $0x20] sm:$0xff]
      %v193 = vld [vmem:[%s174 + $0x28] sm:$0xff]
      %v194 = vld [vmem:[%s174 + $0x30] sm:$0xff]
      %v195 = vld [vmem:[%s174 + $0x38] sm:$0xff]
      %v196 = vld [vmem:[%s174 + $0x40] sm:$0xff]
      %v197 = vld [vmem:[%s174 + $0x48] sm:$0xff]
      %v198 = vld [vmem:[%s174 + $0x50] sm:$0xff]
      %v199 = vld [vmem:[%s174 + $0x58] sm:$0xff]
      %v200 = vld [vmem:[%s174 + $0x60] sm:$0xff]
      %v201 = vld [vmem:[%s174 + $0x68] sm:$0xff]
      %v202 = vld [vmem:[%s174 + $0x70] sm:$0xff]
      %v203 = vld [vmem:[%s174 + $0x78] sm:$0xff]
      %v204 = vld [vmem:[%s1] sm:$0xff]
      %v205 = vld [vmem:[%s1 + $0x8] sm:$0xff]
      %v206 = vld [vmem:[%s1 + $0x10] sm:$0xff]
      %v207 = vld [vmem:[%s1 + $0x18] sm:$0xff]
      %vm208 = vcmask 261120
      %v210 = vsel %vm208, %v188, 0
      %v213 = vsel %vm208, %v189, 0
      %v216 = vsel %vm208, %v190, 0
      %v219 = vsel %vm208, %v191, 0
      %v222 = vsel %vm208, %v192, 0
      %v225 = vsel %vm208, %v193, 0
      %v228 = vsel %vm208, %v194, 0
      %v231 = vsel %vm208, %v195, 0
      %v234 = vsel %vm208, %v196, 0
      %v237 = vsel %vm208, %v197, 0
      %v240 = vsel %vm208, %v198, 0
      %v243 = vsel %vm208, %v199, 0
      %v246 = vsel %vm208, %v200, 0
      %v249 = vsel %vm208, %v201, 0
      %v252 = vsel %vm208, %v202, 0
      %v255 = vsel %vm208, %v203, 0
      %257 = vmatprep.subr.mxu0 0.0
      %258 = vmatpush1.msra.mxu0 0.0
      %259 = vmatprep.subr.mxu0 0.0
      %260 = vmatpush1.msra.mxu0 0.0
      %261 = vmatprep.subr.mxu0 0.0
      %262 = vmatpush1.msra.mxu0 0.0
      %263 = vmatprep.subr.mxu0 0.0
      %264 = vmatpush1.msra.mxu0 0.0
      %265 = vmatprep.subr.mxu0 0.0
      %266 = vmatpush1.msra.mxu0 0.0
      %267 = vmatprep.subr.mxu0 0.0
      %268 = vmatpush1.msra.mxu0 0.0
      %269 = vmatprep.subr.mxu0 0.0
      %270 = vmatpush1.msra.mxu0 0.0
      %271 = vmatprep.subr.mxu0 0.0
      %272 = vmatpush1.msra.mxu0 0.0
      %273 = vmatprep.subr.mxu0 0.0
      %274 = vmatpush1.msra.mxu0 0.0
      %275 = vmatprep.subr.mxu0 0.0
      %276 = vmatpush1.msra.mxu0 0.0
      %277 = vmatprep.subr.mxu0 0.0
      %278 = vmatpush1.msra.mxu0 0.0
      %279 = vmatprep.subr.mxu0 0.0
      %280 = vmatpush1.msra.mxu0 0.0
      %281 = vmatprep.subr.mxu0 0.0
      %282 = vmatpush1.msra.mxu0 %v207
      %283 = vmatprep.subr.mxu0 0.0
      %284 = vmatpush1.msra.mxu0 %v206
      %285 = vmatprep.subr.mxu0 0.0
      %286 = vmatpush1.msra.mxu0 %v205
      %287 = vmatprep.subr.mxu0 0.0
      %288 = vmatpush1.msra.mxu0 %v204
      %289 = vmatprep.subr.mxu0 0.0
      %290 = vmatpush2.msra.mxu0 0.0
      %291 = vmatprep.subr.mxu0 0.0
      %292 = vmatpush2.msra.mxu0 0.0
      %293 = vmatprep.subr.mxu0 0.0
      %294 = vmatpush2.msra.mxu0 0.0
      %295 = vmatprep.subr.mxu0 0.0
      %296 = vmatpush2.msra.mxu0 0.0
      %297 = vmatprep.subr.mxu0 0.0
      %298 = vmatpush2.msra.mxu0 0.0
      %299 = vmatprep.subr.mxu0 0.0
      %300 = vmatpush2.msra.mxu0 0.0
      %301 = vmatprep.subr.mxu0 0.0
      %302 = vmatpush2.msra.mxu0 0.0
      %303 = vmatprep.subr.mxu0 0.0
      %304 = vmatpush2.msra.mxu0 0.0
      %305 = vmatprep.subr.mxu0 0.0
      %306 = vmatpush2.msra.mxu0 0.0
      %307 = vmatprep.subr.mxu0 0.0
      %308 = vmatpush2.msra.mxu0 0.0
      %309 = vmatprep.subr.mxu0 0.0
      %310 = vmatpush2.msra.mxu0 0.0
      %311 = vmatprep.subr.mxu0 0.0
      %312 = vmatpush2.msra.mxu0 0.0
      %313 = vmatprep.subr.mxu0 0.0
      %314 = vmatpush2.msra.mxu0 0.0
      %315 = vmatprep.subr.mxu0 0.0
      %316 = vmatpush2.msra.mxu0 0.0
      %317 = vmatprep.subr.mxu0 0.0
      %318 = vmatpush2.msra.mxu0 0.0
      %319 = vmatprep.subr.mxu0 0.0
      %320 = vmatpush2.msra.mxu0 0.0
      %321 = vmatprep.mubr.f32.mxu0 0.0
      %322 = vmatmul.mubr.f32.gmra.mxu0 %v210
      %v323 = vpop.f32.mrf.mxu0
      %v324 = vadd.f32 0.0, %v323
      %v325 = vpop.f32.mrf.mxu0
      %326 = vmatprep.mubr.f32.mxu0 0.0
      %327 = vmatmul.mubr.f32.gmra.mxu0 %v213
      %v328 = vpop.f32.mrf.mxu0
      %v329 = vadd.f32 0.0, %v328
      %v330 = vpop.f32.mrf.mxu0
      %331 = vmatprep.mubr.f32.mxu0 0.0
      %332 = vmatmul.mubr.f32.gmra.mxu0 %v216
      %v333 = vpop.f32.mrf.mxu0
      %v334 = vadd.f32 0.0, %v333
      %v335 = vpop.f32.mrf.mxu0
      %336 = vmatprep.mubr.f32.mxu0 0.0
      %337 = vmatmul.mubr.f32.gmra.mxu0 %v219
      %v338 = vpop.f32.mrf.mxu0
      %v339 = vadd.f32 0.0, %v338
      %v340 = vpop.f32.mrf.mxu0
      %341 = vmatprep.mubr.f32.mxu0 0.0
      %342 = vmatmul.mubr.f32.gmra.mxu0 %v222
      %v343 = vpop.f32.mrf.mxu0
      %v344 = vadd.f32 0.0, %v343
      %v345 = vpop.f32.mrf.mxu0
      %346 = vmatprep.mubr.f32.mxu0 0.0
      %347 = vmatmul.mubr.f32.gmra.mxu0 %v225
      %v348 = vpop.f32.mrf.mxu0
      %v349 = vadd.f32 0.0, %v348
      %v350 = vpop.f32.mrf.mxu0
      %351 = vmatprep.mubr.f32.mxu0 0.0
      %352 = vmatmul.mubr.f32.gmra.mxu0 %v228
      %v353 = vpop.f32.mrf.mxu0
      %v354 = vadd.f32 0.0, %v353
      %v355 = vpop.f32.mrf.mxu0
      %356 = vmatprep.mubr.f32.mxu0 0.0
      %357 = vmatmul.mubr.f32.gmra.mxu0 %v231
      %v358 = vpop.f32.mrf.mxu0
      %v359 = vadd.f32 0.0, %v358
      %v360 = vpop.f32.mrf.mxu0
      %361 = vmatprep.mubr.f32.mxu0 0.0
      %362 = vmatmul.mubr.f32.gmra.mxu0 %v234
      %v363 = vpop.f32.mrf.mxu0
      %v364 = vadd.f32 0.0, %v363
      %v365 = vpop.f32.mrf.mxu0
      %366 = vmatprep.mubr.f32.mxu0 0.0
      %367 = vmatmul.mubr.f32.gmra.mxu0 %v237
      %v368 = vpop.f32.mrf.mxu0
      %v369 = vadd.f32 0.0, %v368
      %v370 = vpop.f32.mrf.mxu0
      %371 = vmatprep.mubr.f32.mxu0 0.0
      %372 = vmatmul.mubr.f32.gmra.mxu0 %v240
      %v373 = vpop.f32.mrf.mxu0
      %v374 = vadd.f32 0.0, %v373
      %v375 = vpop.f32.mrf.mxu0
      %376 = vmatprep.mubr.f32.mxu0 0.0
      %377 = vmatmul.mubr.f32.gmra.mxu0 %v243
      %v378 = vpop.f32.mrf.mxu0
      %v379 = vadd.f32 0.0, %v378
      %v380 = vpop.f32.mrf.mxu0
      %381 = vmatprep.mubr.f32.mxu0 0.0
      %382 = vmatmul.mubr.f32.gmra.mxu0 %v246
      %v383 = vpop.f32.mrf.mxu0
      %v384 = vadd.f32 0.0, %v383
      %v385 = vpop.f32.mrf.mxu0
      %386 = vmatprep.mubr.f32.mxu0 0.0
      %387 = vmatmul.mubr.f32.gmra.mxu0 %v249
      %v388 = vpop.f32.mrf.mxu0
      %v389 = vadd.f32 0.0, %v388
      %v390 = vpop.f32.mrf.mxu0
      %391 = vmatprep.mubr.f32.mxu0 0.0
      %392 = vmatmul.mubr.f32.gmra.mxu0 %v252
      %v393 = vpop.f32.mrf.mxu0
      %v394 = vadd.f32 0.0, %v393
      %v395 = vpop.f32.mrf.mxu0
      %396 = vmatprep.mubr.f32.mxu0 0.0
      %397 = vmatmul.mubr.f32.gmra.mxu0 %v255
      %v398 = vpop.f32.mrf.mxu0
      %v399 = vadd.f32 0.0, %v398
      %v400 = vpop.f32.mrf.mxu0
      %401 = vdwg.mxu0
      %v402 = vpack.c.bf16 %v329, %v324
      %v403 = vpack.c.bf16 %v339, %v334
      %v404 = vpack.c.bf16 %v349, %v344
      %v405 = vpack.c.bf16 %v359, %v354
      %v406 = vpack.c.bf16 %v369, %v364
      %v407 = vpack.c.bf16 %v379, %v374
      %v408 = vpack.c.bf16 %v389, %v384
      %v409 = vpack.c.bf16 %v399, %v394
      %v418 = vunpack.c.l.b16 %v402
      %v419 = vunpack.c.h.b16 %v402
      %v420 = vunpack.c.l.b16 %v403
      %v421 = vunpack.c.h.b16 %v403
      %v422 = vunpack.c.l.b16 %v404
      %v423 = vunpack.c.h.b16 %v404
      %v424 = vunpack.c.l.b16 %v405
      %v425 = vunpack.c.h.b16 %v405
      %v426 = vunpack.c.l.b16 %v406
      %v427 = vunpack.c.h.b16 %v406
      %v428 = vunpack.c.l.b16 %v407
      %v429 = vunpack.c.h.b16 %v407
      %v430 = vunpack.c.l.b16 %v408
      %v431 = vunpack.c.h.b16 %v408
      %v432 = vunpack.c.l.b16 %v409
      %v433 = vunpack.c.h.b16 %v409
      %v434 = vpack.c.b16 %v418, %v418
      %v435 = vpack.c.b16 %v419, %v419
      %v436 = vpack.c.b16 %v420, %v420
      %v437 = vpack.c.b16 %v421, %v421
      %v438 = vpack.c.b16 %v422, %v422
      %v439 = vpack.c.b16 %v423, %v423
      %v440 = vpack.c.b16 %v424, %v424
      %v441 = vpack.c.b16 %v425, %v425
      %v442 = vpack.c.b16 %v426, %v426
      %v443 = vpack.c.b16 %v427, %v427
      %v444 = vpack.c.b16 %v428, %v428
      %v445 = vpack.c.b16 %v429, %v429
      %v446 = vpack.c.b16 %v430, %v430
      %v447 = vpack.c.b16 %v431, %v431
      %v448 = vpack.c.b16 %v432, %v432
      %v449 = vpack.c.b16 %v433, %v433
      %vm466 = vcmask 519168
      %467 = vst.msk [vmem:[%s180] sm:$0xf] %vm466, %v434
      %468 = vst.msk [vmem:[%s180 + $0x4] sm:$0xf] %vm466, %v435
      %469 = vst.msk [vmem:[%s180 + $0x8] sm:$0xf] %vm466, %v436
      %470 = vst.msk [vmem:[%s180 + $0xc] sm:$0xf] %vm466, %v437
      %471 = vst.msk [vmem:[%s180 + $0x10] sm:$0xf] %vm466, %v438
      %472 = vst.msk [vmem:[%s180 + $0x14] sm:$0xf] %vm466, %v439
      %473 = vst.msk [vmem:[%s180 + $0x18] sm:$0xf] %vm466, %v440
      %474 = vst.msk [vmem:[%s180 + $0x1c] sm:$0xf] %vm466, %v441
      %475 = vst.msk [vmem:[%s180 + $0x20] sm:$0xf] %vm466, %v442
      %476 = vst.msk [vmem:[%s180 + $0x24] sm:$0xf] %vm466, %v443
      %477 = vst.msk [vmem:[%s180 + $0x28] sm:$0xf] %vm466, %v444
      %478 = vst.msk [vmem:[%s180 + $0x2c] sm:$0xf] %vm466, %v445
      %479 = vst.msk [vmem:[%s180 + $0x30] sm:$0xf] %vm466, %v446
      %480 = vst.msk [vmem:[%s180 + $0x34] sm:$0xf] %vm466, %v447
      %481 = vst.msk [vmem:[%s180 + $0x38] sm:$0xf] %vm466, %v448
      %482 = vst.msk [vmem:[%s180 + $0x3c] sm:$0xf] %vm466, %v449
      %499 = vrot.lane.b32.xlu0 %v324, 64
      %v500 = vpop.permute.xlu0 %499
      %501 = vrot.lane.b32.xlu0 %v329, 64
      %v502 = vpop.permute.xlu0 %501
      %503 = vrot.lane.b32.xlu0 %v334, 64
      %v504 = vpop.permute.xlu0 %503
      %505 = vrot.lane.b32.xlu0 %v339, 64
      %v506 = vpop.permute.xlu0 %505
      %507 = vrot.lane.b32.xlu0 %v344, 64
      %v508 = vpop.permute.xlu0 %507
      %509 = vrot.lane.b32.xlu0 %v349, 64
      %v510 = vpop.permute.xlu0 %509
      %511 = vrot.lane.b32.xlu0 %v354, 64
      %v512 = vpop.permute.xlu0 %511
      %513 = vrot.lane.b32.xlu0 %v359, 64
      %v514 = vpop.permute.xlu0 %513
      %515 = vrot.lane.b32.xlu0 %v364, 64
      %v516 = vpop.permute.xlu0 %515
      %517 = vrot.lane.b32.xlu0 %v369, 64
      %v518 = vpop.permute.xlu0 %517
      %519 = vrot.lane.b32.xlu0 %v374, 64
      %v520 = vpop.permute.xlu0 %519
      %521 = vrot.lane.b32.xlu0 %v379, 64
      %v522 = vpop.permute.xlu0 %521
      %523 = vrot.lane.b32.xlu0 %v384, 64
      %v524 = vpop.permute.xlu0 %523
      %525 = vrot.lane.b32.xlu0 %v389, 64
      %v526 = vpop.permute.xlu0 %525
      %527 = vrot.lane.b32.xlu0 %v394, 64
      %v528 = vpop.permute.xlu0 %527
      %529 = vrot.lane.b32.xlu0 %v399, 64
      %v530 = vpop.permute.xlu0 %529
      %vm547 = vcmask 64512
      %548 = vst.msk [vmem:[%s186] sm:$0xff] %vm547, %v500
      %549 = vst.msk [vmem:[%s186 + $0x8] sm:$0xff] %vm547, %v502
      %550 = vst.msk [vmem:[%s186 + $0x10] sm:$0xff] %vm547, %v504
      %551 = vst.msk [vmem:[%s186 + $0x18] sm:$0xff] %vm547, %v506
      %552 = vst.msk [vmem:[%s186 + $0x20] sm:$0xff] %vm547, %v508
      %553 = vst.msk [vmem:[%s186 + $0x28] sm:$0xff] %vm547, %v510
      %554 = vst.msk [vmem:[%s186 + $0x30] sm:$0xff] %vm547, %v512
      %555 = vst.msk [vmem:[%s186 + $0x38] sm:$0xff] %vm547, %v514
      %556 = vst.msk [vmem:[%s186 + $0x40] sm:$0xff] %vm547, %v516
      %557 = vst.msk [vmem:[%s186 + $0x48] sm:$0xff] %vm547, %v518
      %558 = vst.msk [vmem:[%s186 + $0x50] sm:$0xff] %vm547, %v520
      %559 = vst.msk [vmem:[%s186 + $0x58] sm:$0xff] %vm547, %v522
      %560 = vst.msk [vmem:[%s186 + $0x60] sm:$0xff] %vm547, %v524
      %561 = vst.msk [vmem:[%s186 + $0x68] sm:$0xff] %vm547, %v526
      %562 = vst.msk [vmem:[%s186 + $0x70] sm:$0xff] %vm547, %v528
      %563 = vst.msk [vmem:[%s186 + $0x78] sm:$0xff] %vm547, %v530
      %s564 = smul.u32 16, %s15
      %p565 = scmp.lt.s32.totalorder %s564, 31
      %s566 = scalar_select %p565, %s564, 31
      %s567 = smul.addr %s566, 4
      %s568 = scalar_lea.vmem %s2, %s567
      %s569 = smul.u32 16, %s15
      %p570 = scmp.lt.s32.totalorder %s569, 31
      %s571 = scalar_select %p570, %s569, 31
      %s572 = smul.addr %s571, 8
      %s573 = scalar_lea.vmem %s3, %s572
      // Predicated region
      $region29: #{tpu_custom_call.1} parent=27 // pred_check
        %p574 = pneg %p80
      $region30: #{tpu_custom_call.1} parent=27 // pred_check_branch
        %576 = sbr.rel (%p574) target = $region32
      $region31: #{tpu_custom_call.1} parent=27 // pred_region
        %s577 = smul.u32 16, %s15
      $region32: #{tpu_custom_call.1} parent=27 // pred_fallthru
        _
      // Predicated region
      $region33: #{tpu_custom_call.1} parent=27 // pred_check
        %p578 = pneg %p106
      $region34: #{tpu_custom_call.1} parent=27 // pred_check_branch
        %580 = sbr.rel (%p578) target = $region36
      $region35: #{tpu_custom_call.1} parent=27 // pred_region
        %s581 = smul.u32 16, %s15
      $region36: #{tpu_custom_call.1} parent=27 // pred_fallthru
        _
    $region28: #{tpu_custom_call.1} parent=5 // pred_fallthru
      _
    %p582 = scmp.le.s32.totalorder 2, %s10
    // Predicated region
    $region37: #{tpu_custom_call.1} parent=5 // pred_check
      %p583 = pneg %p582
    $region38: #{tpu_custom_call.1} parent=5 // pred_check_branch
      %585 = sbr.rel (%p583) target = $region40
    $region39: #{tpu_custom_call.1} parent=5 // pred_region
      %s586 = ssub.s32 %s10, 2
      // Predicated region
      $region41: #{tpu_custom_call.1} parent=39 // pred_check
        %p587 = pneg %p86
      $region42: #{tpu_custom_call.1} parent=39 // pred_check_branch
        %589 = sbr.rel (%p587) target = $region44
      $region43: #{tpu_custom_call.1} parent=39 // pred_region
        %s590 = smul.u32 16, %s16
        %p591 = scmp.lt.s32.totalorder %s590, 31
        %s592 = scalar_select %p591, %s590, 31
        %s593 = smul.addr %s592, 4
        %s594 = scalar_lea.vmem %s2, %s593
      $region44: #{tpu_custom_call.1} parent=39 // pred_fallthru
        _
      // Predicated region
      $region45: #{tpu_custom_call.1} parent=39 // pred_check
        %p595 = pneg %p112
      $region46: #{tpu_custom_call.1} parent=39 // pred_check_branch
        %597 = sbr.rel (%p595) target = $region48
      $region47: #{tpu_custom_call.1} parent=39 // pred_region
        %s598 = smul.u32 16, %s16
        %p599 = scmp.lt.s32.totalorder %s598, 31
        %s600 = scalar_select %p599, %s598, 31
        %s601 = smul.addr %s600, 8
        %s602 = scalar_lea.vmem %s3, %s601
      $region48: #{tpu_custom_call.1} parent=39 // pred_fallthru
        _
    $region40: #{tpu_custom_call.1} parent=5 // pred_fallthru
      _
  $region6: #{tpu_custom_call.1} parent=0 // loop_footer
    %s14 = sadd.s32 1, %s10
  $region7: #{tpu_custom_call.1} parent=0 // loop_footer_branch
    %9 = sbr.rel target = $region3
  $region8: #{tpu_custom_call.1} parent=0 // loop_exit
    _

</llo_original>
